<compile_context>
chip_gen: v7x
topology: tpu7x:2x2x1
jax: 0.10.0
libtpu: 0.0.40
codegen_flags: <defaults>
</compile_context>

<pallas_src>
import functools
import math

import jax
import jax.numpy as jnp
from jax.experimental import pallas as pl
from jax.experimental.pallas import tpu as pltpu


def _round_up(n, m):
    return ((n + m - 1) // m) * m


def _gelu_exact(x):
    # nn.GELU() default: 0.5 * x * (1 + erf(x / sqrt(2)))
    return 0.5 * x * (1.0 + jax.lax.erf(x * (1.0 / math.sqrt(2.0))))


def _gelu_tanh(x):
    return jax.nn.gelu(x, approximate=True)


def _vmem_capacity_bytes():
    try:
        return int(pltpu.get_tpu_info().vmem_capacity_bytes)
    except Exception:
        pass
    try:
        kind = jax.devices()[0].device_kind.lower()
        if "v7" in kind:
            return 64 << 20
        return 128 << 20
    except Exception:
        return 64 << 20


# ----------------------------- kernel bodies ---------------------------------

def _mlp_fused_kernel(approx_gelu, x_ref, w1_ref, b1_ref, w2_ref, b2_ref,
                      w3_ref, b3_ref, o_ref):
    gelu = _gelu_tanh if approx_gelu else _gelu_exact
    wdt = w1_ref.dtype
    h1 = gelu(jnp.dot(x_ref[...], w1_ref[...],
                      preferred_element_type=jnp.float32) + b1_ref[...])
    h2 = gelu(jnp.dot(h1.astype(wdt), w2_ref[...],
                      preferred_element_type=jnp.float32) + b2_ref[...])
    out = jnp.dot(h2.astype(wdt), w3_ref[...],
                  preferred_element_type=jnp.float32) + b3_ref[...]
    o_ref[...] = out.astype(o_ref.dtype)


def _mlp_ktiled_kernel(approx_gelu, x_ref, w1_ref, b1_ref, w2_ref, b2_ref,
                       w3_ref, b3_ref, o_ref, acc_ref):
    gelu = _gelu_tanh if approx_gelu else _gelu_exact
    wdt = w2_ref.dtype
    k = pl.program_id(1)

    @pl.when(k == 0)
    def _():
        acc_ref[...] = jnp.zeros_like(acc_ref)

    # h1 column-chunk for this k: GELU(x @ w1[:, k_cols] + b1[k_cols])
    h1k = gelu(jnp.dot(x_ref[...], w1_ref[...],
                       preferred_element_type=jnp.float32) + b1_ref[...])
    # Accumulate the second matmul over the hidden (K) dimension.
    acc_ref[...] += jnp.dot(h1k.astype(wdt), w2_ref[...],
                            preferred_element_type=jnp.float32)

    @pl.when(k == pl.num_programs(1) - 1)
    def _():
        h2 = gelu(acc_ref[...] + b2_ref[...])
        out = jnp.dot(h2.astype(wdt), w3_ref[...],
                      preferred_element_type=jnp.float32) + b3_ref[...]
        o_ref[...] = out.astype(o_ref.dtype)


# ------------------------------- wrapper --------------------------------------

def prepare_mlp_params(params, compute_dtype=jnp.float32):
    """Pad weights/biases to full 128-lane multiples ONCE (hoisted out of the hot path).

    Weights are stored [in_features, out_features] and optionally cast to
    `compute_dtype` (e.g. jnp.bfloat16 for native MXU throughput); biases stay
    float32 because the matmuls accumulate in float32.
    """
    w1, b1 = params["w1"], params["b1"]
    w2, b2 = params["w2"], params["b2"]
    w3, b3 = params["w3"], params["b3"]
    in_dim, hid_dim = w1.shape
    out_dim = w3.shape[1]
    in_p, hid_p, out_p = (_round_up(d, 128) for d in (in_dim, hid_dim, out_dim))

    def pad_w(w, r, c):
        return jnp.pad(w, ((0, r - w.shape[0]), (0, c - w.shape[1]))).astype(compute_dtype)

    def pad_b(b, c):
        return jnp.pad(b, (0, c - b.shape[0])).reshape(1, c).astype(jnp.float32)

    return {
        "_prepared": True,
        "compute_dtype": jnp.dtype(compute_dtype),
        "dims": (in_dim, hid_dim, out_dim),
        "padded_dims": (in_p, hid_p, out_p),
        "w1": pad_w(w1, in_p, hid_p), "b1": pad_b(b1, hid_p),
        "w2": pad_w(w2, hid_p, hid_p), "b2": pad_b(b2, hid_p),
        "w3": pad_w(w3, hid_p, out_p), "b3": pad_b(b3, out_p),
    }


_SINGLE_BUFFER_OK = True  # cached capability probe for pl.Buffered(1)


def _call_with_resident_fallback(make_call):
    """Try single-buffered resident weights first; fall back to default buffering."""
    global _SINGLE_BUFFER_OK
    if _SINGLE_BUFFER_OK:
        try:
            return make_call(True)
        except Exception:
            _SINGLE_BUFFER_OK = False
    return make_call(False)


def mlp_pallas(x, params, *, tm=None, tk=None, compute_dtype=None,
               approx_gelu=False, force_ktiled=False):
    """Fused MLP forward: (GELU(GELU(x@w1+b1)@w2+b2))@w3+b3.

    `params` may be the raw dict from init_mlp_params (padded on the fly) or,
    preferably, the output of prepare_mlp_params (padding hoisted out of the
    hot path). `compute_dtype` is only used when raw params are given.
    """
    if not params.get("_prepared", False):
        params = prepare_mlp_params(params, compute_dtype=compute_dtype or jnp.float32)
    cdt = params["compute_dtype"]
    in_dim, hid_dim, out_dim = params["dims"]
    in_p, hid_p, out_p = params["padded_dims"]

    B, x_in = x.shape
    assert x_in == in_dim, f"x feature dim {x_in} != {in_dim}"
    cb = jnp.dtype(cdt).itemsize
    f32 = 4
    out_dtype = x.dtype

    # Generation-aware VMEM budget & default batch tile.
    cap = _vmem_capacity_bytes()
    budget = max(32 << 20, int(cap * 0.78))   # ~100 MiB on 128 MiB parts, ~50 MiB on v7x
    tm_req = tm if tm is not None else (512 if cap >= (96 << 20) else 256)

    # Resident-weight footprint of the fused path (single-buffered) + biases.
    w_bytes_fused = cb * (in_p * hid_p + hid_p * hid_p + hid_p * out_p) \
        + f32 * (2 * hid_p + out_p)
    # 2x safety so the fused path still fits even if single-buffering is unavailable.
    use_ktiled = force_ktiled or (2 * w_bytes_fused > budget)

    w1, b1, w2, b2, w3, b3 = (params[k] for k in ("w1", "b1", "w2", "b2", "w3", "b3"))
    flops = 2 * (in_p * hid_p + hid_p * hid_p + hid_p * out_p)

    if not use_ktiled:
        # VMEM bytes per batch-tile row: double-buffered x/out tiles + live h1/h2 (f32).
        per_row = 2 * (in_p * cb + out_p * f32) + 2 * hid_p * f32
        avail = max(budget - 2 * w_bytes_fused, 8 * per_row)
        tm_eff = min(_round_up(tm_req, 8), _round_up(B, 8))
        while tm_eff > 8 and tm_eff * per_row > avail:
            tm_eff = _round_up(max(8, tm_eff // 2), 8)
        # Prefer >=2 batch tiles so the "parallel" axis can shard over v7x's 2 TCs.
        if tm is None and B >= 16 and tm_eff >= _round_up(B, 8):
            tm_eff = _round_up(_round_up(B, 8) // 2, 8)
        B_p = _round_up(B, tm_eff)

        x_p = jnp.pad(x.astype(cdt), ((0, B_p - B), (0, in_p - in_dim)))
        cost = pl.CostEstimate(
            flops=int(flops * B_p),
            transcendentals=int(2 * B_p * hid_p),
            bytes_accessed=int(B_p * in_p * cb + w_bytes_fused
                               + B_p * out_p * jnp.dtype(out_dtype).itemsize))

        def make_call(single_buffer):
            def res(shape):
                if single_buffer:
                    return pl.BlockSpec(shape, lambda i: (0, 0),
                                        pipeline_mode=pl.Buffered(1))
                return pl.BlockSpec(shape, lambda i: (0, 0))

            return pl.pallas_call(
                functools.partial(_mlp_fused_kernel, approx_gelu),
                out_shape=jax.ShapeDtypeStruct((B_p, out_p), out_dtype),
                grid=(B_p // tm_eff,),
                in_specs=[
                    pl.BlockSpec((tm_eff, in_p), lambda i: (i, 0)),
                    res((in_p, hid_p)), res((1, hid_p)),
                    res((hid_p, hid_p)), res((1, hid_p)),
                    res((hid_p, out_p)), res((1, out_p)),
                ],
                out_specs=pl.BlockSpec((tm_eff, out_p), lambda i: (i, 0)),
                compiler_params=pltpu.CompilerParams(
                    dimension_semantics=("parallel",),
                    vmem_limit_bytes=int(budget)),
                cost_estimate=cost,
            )(x_p, w1, b1, w2, b2, w3, b3)

        out = _call_with_resident_fallback(make_call)
        return out[:B, :out_dim]

    # ---- K-tiled fallback: stream w1 column-tiles / w2 row-tiles, f32 accumulator.
    tk_req = tk if tk is not None else 512
    tk_eff = max(128, min(_round_up(tk_req, 128), hid_p))
    while hid_p % tk_eff:
        tk_eff -= 128

    w_fixed = 2 * cb * hid_p * out_p + f32 * (hid_p + out_p)              # w3, b2, b3
    w_stream = 2 * cb * (in_p * tk_eff + tk_eff * hid_p) + 2 * f32 * tk_eff
    per_row = 2 * (in_p * cb + out_p * f32) + hid_p * f32 + tk_eff * (f32 + cb)
    avail = max(budget - w_fixed - w_stream, 8 * per_row)
    tm_eff = min(_round_up(tm_req, 8), _round_up(B, 8))
    while tm_eff > 8 and tm_eff * per_row > avail:
        tm_eff = _round_up(max(8, tm_eff // 2), 8)
    if tm is None and B >= 16 and tm_eff >= _round_up(B, 8):
        tm_eff = _round_up(_round_up(B, 8) // 2, 8)
    B_p = _round_up(B, tm_eff)

    x_p = jnp.pad(x.astype(cdt), ((0, B_p - B), (0, in_p - in_dim)))
    cost = pl.CostEstimate(
        flops=int(flops * B_p),
        transcendentals=int(2 * B_p * hid_p),
        bytes_accessed=int(B_p * in_p * cb
                           + cb * (in_p * hid_p + hid_p * hid_p + hid_p * out_p)
                           + f32 * (2 * hid_p + out_p)
                           + B_p * out_p * jnp.dtype(out_dtype).itemsize))

    def make_call(single_buffer):
        def res(shape):
            if single_buffer:
                return pl.BlockSpec(shape, lambda i, k: (0, 0),
                                    pipeline_mode=pl.Buffered(1))
            return pl.BlockSpec(shape, lambda i, k: (0, 0))

        return pl.pallas_call(
            functools.partial(_mlp_ktiled_kernel, approx_gelu),
            out_shape=jax.ShapeDtypeStruct((B_p, out_p), out_dtype),
            grid=(B_p // tm_eff, hid_p // tk_eff),
            in_specs=[
                pl.BlockSpec((tm_eff, in_p), lambda i, k: (i, 0)),
                pl.BlockSpec((in_p, tk_eff), lambda i, k: (0, k)),    # w1 column tile
                pl.BlockSpec((1, tk_eff), lambda i, k: (0, k)),       # b1 column tile
                pl.BlockSpec((tk_eff, hid_p), lambda i, k: (k, 0)),   # w2 row tile
                res((1, hid_p)),                                      # b2 (resident)
                res((hid_p, out_p)),                                  # w3 (resident)
                res((1, out_p)),                                      # b3 (resident)
            ],
            out_specs=pl.BlockSpec((tm_eff, out_p), lambda i, k: (i, 0)),
            scratch_shapes=[pltpu.VMEM((tm_eff, hid_p), jnp.float32)],
            compiler_params=pltpu.CompilerParams(
                dimension_semantics=("parallel", "arbitrary"),
                vmem_limit_bytes=int(budget)),
            cost_estimate=cost,
        )(x_p, w1, b1, w2, b2, w3, b3)

    out = _call_with_resident_fallback(make_call)
    return out[:B, :out_dim]


# ------------------------------ init / reference ------------------------------

def init_mlp_params(key, input_dim, hidden_dim, output_dim, dtype=jnp.float32):
    """Deterministic init mimicking nn.Linear: U(-1/sqrt(fan_in), 1/sqrt(fan_in))."""
    ks = jax.random.split(key, 6)

    def linear(kw, kb, fan_in, fan_out):
        bound = 1.0 / math.sqrt(fan_in)
        w = jax.random.uniform(kw, (fan_in, fan_out), dtype, -bound, bound)
        b = jax.random.uniform(kb, (fan_out,), dtype, -bound, bound)
        return w, b

    w1, b1 = linear(ks[0], ks[1], input_dim, hidden_dim)
    w2, b2 = linear(ks[2], ks[3], hidden_dim, hidden_dim)
    w3, b3 = linear(ks[4], ks[5], hidden_dim, output_dim)
    return dict(w1=w1, b1=b1, w2=w2, b2=b2, w3=w3, b3=b3)


def mlp_ref(x, p):
    h = _gelu_exact(x @ p["w1"] + p["b1"])
    h = _gelu_exact(h @ p["w2"] + p["b2"])
    return h @ p["w3"] + p["b3"]


if __name__ == "__main__":
    key = jax.random.PRNGKey(0)
    k_x, k_p, k_p2 = jax.random.split(key, 3)

    # Small config consistent with the module: batch=8, input=32, hidden=32, output=16.
    batch, input_dim, hidden_dim, output_dim = 8, 32, 32, 16
    x = jax.random.normal(k_x, (batch, input_dim), dtype=jnp.float32)
    params = init_mlp_params(k_p, input_dim, hidden_dim, output_dim)
    prepared = prepare_mlp_params(params)        # pad weights once (hot-path hoist)

    out = jax.block_until_ready(mlp_pallas(x, prepared))
    expected = mlp_ref(x, params)
    assert out.shape == (batch, output_dim)
    assert jnp.allclose(out, expected, atol=1e-5, rtol=1e-5), "fused mismatch vs reference"

    # Multi-step batch tiling + padding (grid > 1, odd batch size).
    batch2 = 24
    x2 = jax.random.normal(jax.random.PRNGKey(1), (batch2, input_dim), dtype=jnp.float32)
    out2 = jax.block_until_ready(mlp_pallas(x2, prepared, tm=8))
    expected2 = mlp_ref(x2, params)
    assert out2.shape == (batch2, output_dim)
    assert jnp.allclose(out2, expected2, atol=1e-5, rtol=1e-5), "tiled mismatch vs reference"

    # bf16 MXU operands (f32 accumulation) behind the compute_dtype flag.
    prepared_bf16 = prepare_mlp_params(params, compute_dtype=jnp.bfloat16)
    out_bf16 = jax.block_until_ready(mlp_pallas(x2, prepared_bf16, tm=8))
    assert out_bf16.shape == (batch2, output_dim)
    assert jnp.allclose(out_bf16, expected2, atol=5e-2, rtol=5e-2), "bf16 mismatch vs reference"

    # K-tiled fallback path (hidden-dim reduction grid axis + f32 VMEM accumulator).
    hidden_dim_kt, batch3 = 256, 16
    params_kt = init_mlp_params(k_p2, input_dim, hidden_dim_kt, output_dim)
    prepared_kt = prepare_mlp_params(params_kt)
    x3 = jax.random.normal(jax.random.PRNGKey(2), (batch3, input_dim), dtype=jnp.float32)
    out3 = jax.block_until_ready(
        mlp_pallas(x3, prepared_kt, tm=8, tk=128, force_ktiled=True))
    expected3 = mlp_ref(x3, params_kt)
    assert out3.shape == (batch3, output_dim)
    assert jnp.allclose(out3, expected3, atol=1e-5, rtol=1e-5), "k-tiled mismatch vs reference"

    print("KERNEL_OK")
</pallas_src>

<mosaic_0001>
module attributes {stable_mosaic.version = 11 : i64} {
  func.func @_mlp_fused_kernel(%arg0: i32, %arg1: memref<8x128xf32, #tpu.memory_space<vmem>>, %arg2: memref<128x128xf32, #tpu.memory_space<vmem>>, %arg3: memref<1x128xf32, #tpu.memory_space<vmem>>, %arg4: memref<128x128xf32, #tpu.memory_space<vmem>>, %arg5: memref<1x128xf32, #tpu.memory_space<vmem>>, %arg6: memref<128x128xf32, #tpu.memory_space<vmem>>, %arg7: memref<1x128xf32, #tpu.memory_space<vmem>>, %arg8: memref<8x128xf32, #tpu.memory_space<vmem>>) attributes {dimension_semantics = [#tpu.dimension_semantics<parallel>], iteration_bounds = array<i64: 1>, scalar_prefetch = 0 : i64, scratch_operands = 0 : i64, tpu.core_type = #tpu.core_type<tc>, window_params = [{transform_indices = @transform_0, window_bounds = array<i64: 8, 128>}, {pipeline_mode = #tpu.pipeline_mode<synchronous>, transform_indices = @transform_1, window_bounds = array<i64: 128, 128>}, {pipeline_mode = #tpu.pipeline_mode<synchronous>, transform_indices = @transform_2, window_bounds = array<i64: 1, 128>}, {pipeline_mode = #tpu.pipeline_mode<synchronous>, transform_indices = @transform_3, window_bounds = array<i64: 128, 128>}, {pipeline_mode = #tpu.pipeline_mode<synchronous>, transform_indices = @transform_4, window_bounds = array<i64: 1, 128>}, {pipeline_mode = #tpu.pipeline_mode<synchronous>, transform_indices = @transform_5, window_bounds = array<i64: 128, 128>}, {pipeline_mode = #tpu.pipeline_mode<synchronous>, transform_indices = @transform_6, window_bounds = array<i64: 1, 128>}, {transform_indices = @transform_7, window_bounds = array<i64: 8, 128>}]} {
    %c0 = arith.constant 0 : index
    %c0_0 = arith.constant 0 : index
    %0 = vector.load %arg1[%c0, %c0_0] : memref<8x128xf32, #tpu.memory_space<vmem>>, vector<8x128xf32>
    %c0_1 = arith.constant 0 : index
    %c0_2 = arith.constant 0 : index
    %1 = vector.load %arg2[%c0_1, %c0_2] : memref<128x128xf32, #tpu.memory_space<vmem>>, vector<128x128xf32>
    %cst = arith.constant dense<0.000000e+00> : vector<8x128xf32>
    %2 = tpu.matmul %0, %1, %cst {dimension_numbers = #tpu.dot_dimension_numbers<[1], [0], [0], [1], [0, 0, 1, 1], [], []>} : vector<8x128xf32>, vector<128x128xf32>, vector<8x128xf32> -> vector<8x128xf32>
    %c0_3 = arith.constant 0 : index
    %c0_4 = arith.constant 0 : index
    %3 = vector.load %arg3[%c0_3, %c0_4] : memref<1x128xf32, #tpu.memory_space<vmem>>, vector<1x128xf32>
    %4 = vector.broadcast %3 : vector<1x128xf32> to vector<8x128xf32>
    %5 = arith.addf %2, %4 : vector<8x128xf32>
    %cst_5 = arith.constant 5.000000e-01 : f32
    %6 = vector.broadcast %cst_5 : f32 to vector<8x128xf32>
    %7 = arith.mulf %6, %5 : vector<8x128xf32>
    %cst_6 = arith.constant 0.707106769 : f32
    %8 = vector.broadcast %cst_6 : f32 to vector<8x128xf32>
    %9 = arith.mulf %5, %8 : vector<8x128xf32>
    %10 = math.erf %9 : vector<8x128xf32>
    %cst_7 = arith.constant 1.000000e+00 : f32
    %11 = vector.broadcast %cst_7 : f32 to vector<8x128xf32>
    %12 = arith.addf %11, %10 : vector<8x128xf32>
    %13 = arith.mulf %7, %12 : vector<8x128xf32>
    %c0_8 = arith.constant 0 : index
    %c0_9 = arith.constant 0 : index
    %14 = vector.load %arg4[%c0_8, %c0_9] : memref<128x128xf32, #tpu.memory_space<vmem>>, vector<128x128xf32>
    %cst_10 = arith.constant dense<0.000000e+00> : vector<8x128xf32>
    %15 = tpu.matmul %13, %14, %cst_10 {dimension_numbers = #tpu.dot_dimension_numbers<[1], [0], [0], [1], [0, 0, 1, 1], [], []>} : vector<8x128xf32>, vector<128x128xf32>, vector<8x128xf32> -> vector<8x128xf32>
    %c0_11 = arith.constant 0 : index
    %c0_12 = arith.constant 0 : index
    %16 = vector.load %arg5[%c0_11, %c0_12] : memref<1x128xf32, #tpu.memory_space<vmem>>, vector<1x128xf32>
    %17 = vector.broadcast %16 : vector<1x128xf32> to vector<8x128xf32>
    %18 = arith.addf %15, %17 : vector<8x128xf32>
    %cst_13 = arith.constant 5.000000e-01 : f32
    %19 = vector.broadcast %cst_13 : f32 to vector<8x128xf32>
    %20 = arith.mulf %19, %18 : vector<8x128xf32>
    %cst_14 = arith.constant 0.707106769 : f32
    %21 = vector.broadcast %cst_14 : f32 to vector<8x128xf32>
    %22 = arith.mulf %18, %21 : vector<8x128xf32>
    %23 = math.erf %22 : vector<8x128xf32>
    %cst_15 = arith.constant 1.000000e+00 : f32
    %24 = vector.broadcast %cst_15 : f32 to vector<8x128xf32>
    %25 = arith.addf %24, %23 : vector<8x128xf32>
    %26 = arith.mulf %20, %25 : vector<8x128xf32>
    %c0_16 = arith.constant 0 : index
    %c0_17 = arith.constant 0 : index
    %27 = vector.load %arg6[%c0_16, %c0_17] : memref<128x128xf32, #tpu.memory_space<vmem>>, vector<128x128xf32>
    %cst_18 = arith.constant dense<0.000000e+00> : vector<8x128xf32>
    %28 = tpu.matmul %26, %27, %cst_18 {dimension_numbers = #tpu.dot_dimension_numbers<[1], [0], [0], [1], [0, 0, 1, 1], [], []>} : vector<8x128xf32>, vector<128x128xf32>, vector<8x128xf32> -> vector<8x128xf32>
    %c0_19 = arith.constant 0 : index
    %c0_20 = arith.constant 0 : index
    %29 = vector.load %arg7[%c0_19, %c0_20] : memref<1x128xf32, #tpu.memory_space<vmem>>, vector<1x128xf32>
    %30 = vector.broadcast %29 : vector<1x128xf32> to vector<8x128xf32>
    %31 = arith.addf %28, %30 : vector<8x128xf32>
    %c0_21 = arith.constant 0 : index
    %c0_22 = arith.constant 0 : index
    %32 = vector.load %arg8[%c0_21, %c0_22] : memref<8x128xf32, #tpu.memory_space<vmem>>, vector<8x128xf32>
    tpu.vector_store %arg8[%c0_21, %c0_22], %31 {strides = array<i32>} : memref<8x128xf32, #tpu.memory_space<vmem>>, vector<8x128xf32>,
    return
  }
  func.func @transform_0(%arg0: i32) -> (i32, i32) {
    %c0_i32 = arith.constant 0 : i32
    %c0_i32_0 = arith.constant 0 : i32
    return %arg0, %c0_i32 : i32, i32
  }
  func.func @transform_1(%arg0: i32) -> (i32, i32) {
    %c0_i32 = arith.constant 0 : i32
    %c0_i32_0 = arith.constant 0 : i32
    %c0_i32_1 = arith.constant 0 : i32
    return %c0_i32, %c0_i32_0 : i32, i32
  }
  func.func @transform_2(%arg0: i32) -> (i32, i32) {
    %c0_i32 = arith.constant 0 : i32
    %c0_i32_0 = arith.constant 0 : i32
    %c0_i32_1 = arith.constant 0 : i32
    return %c0_i32, %c0_i32_0 : i32, i32
  }
  func.func @transform_3(%arg0: i32) -> (i32, i32) {
    %c0_i32 = arith.constant 0 : i32
    %c0_i32_0 = arith.constant 0 : i32
    %c0_i32_1 = arith.constant 0 : i32
    return %c0_i32, %c0_i32_0 : i32, i32
  }
  func.func @transform_4(%arg0: i32) -> (i32, i32) {
    %c0_i32 = arith.constant 0 : i32
    %c0_i32_0 = arith.constant 0 : i32
    %c0_i32_1 = arith.constant 0 : i32
    return %c0_i32, %c0_i32_0 : i32, i32
  }
  func.func @transform_5(%arg0: i32) -> (i32, i32) {
    %c0_i32 = arith.constant 0 : i32
    %c0_i32_0 = arith.constant 0 : i32
    %c0_i32_1 = arith.constant 0 : i32
    return %c0_i32, %c0_i32_0 : i32, i32
  }
  func.func @transform_6(%arg0: i32) -> (i32, i32) {
    %c0_i32 = arith.constant 0 : i32
    %c0_i32_0 = arith.constant 0 : i32
    %c0_i32_1 = arith.constant 0 : i32
    return %c0_i32, %c0_i32_0 : i32, i32
  }
  func.func @transform_7(%arg0: i32) -> (i32, i32) {
    %c0_i32 = arith.constant 0 : i32
    %c0_i32_0 = arith.constant 0 : i32
    return %arg0, %c0_i32 : i32, i32
  }
}

module attributes {stable_mosaic.version = 11 : i64} {
  func.func @_mlp_fused_kernel(%arg0: i32, %arg1: memref<8x128xf32, #tpu.memory_space<vmem>>, %arg2: memref<128x128xf32, #tpu.memory_space<vmem>>, %arg3: memref<1x128xf32, #tpu.memory_space<vmem>>, %arg4: memref<128x128xf32, #tpu.memory_space<vmem>>, %arg5: memref<1x128xf32, #tpu.memory_space<vmem>>, %arg6: memref<128x128xf32, #tpu.memory_space<vmem>>, %arg7: memref<1x128xf32, #tpu.memory_space<vmem>>, %arg8: memref<8x128xf32, #tpu.memory_space<vmem>>) attributes {dimension_semantics = [#tpu.dimension_semantics<parallel>], iteration_bounds = array<i64: 1>, scalar_prefetch = 0 : i64, scratch_operands = 0 : i64, tpu.core_type = #tpu.core_type<tc>, window_params = [{transform_indices = @transform_0, window_bounds = array<i64: 8, 128>}, {pipeline_mode = #tpu.pipeline_mode<synchronous>, transform_indices = @transform_1, window_bounds = array<i64: 128, 128>}, {pipeline_mode = #tpu.pipeline_mode<synchronous>, transform_indices = @transform_2, window_bounds = array<i64: 1, 128>}, {pipeline_mode = #tpu.pipeline_mode<synchronous>, transform_indices = @transform_3, window_bounds = array<i64: 128, 128>}, {pipeline_mode = #tpu.pipeline_mode<synchronous>, transform_indices = @transform_4, window_bounds = array<i64: 1, 128>}, {pipeline_mode = #tpu.pipeline_mode<synchronous>, transform_indices = @transform_5, window_bounds = array<i64: 128, 128>}, {pipeline_mode = #tpu.pipeline_mode<synchronous>, transform_indices = @transform_6, window_bounds = array<i64: 1, 128>}, {transform_indices = @transform_7, window_bounds = array<i64: 8, 128>}]} {
    %c0 = arith.constant 0 : index
    %c0_0 = arith.constant 0 : index
    %0 = vector.load %arg1[%c0, %c0_0] : memref<8x128xf32, #tpu.memory_space<vmem>>, vector<8x128xf32>
    %c0_1 = arith.constant 0 : index
    %c0_2 = arith.constant 0 : index
    %1 = vector.load %arg2[%c0_1, %c0_2] : memref<128x128xf32, #tpu.memory_space<vmem>>, vector<128x128xf32>
    %cst = arith.constant dense<0.000000e+00> : vector<8x128xf32>
    %2 = tpu.matmul %0, %1, %cst {dimension_numbers = #tpu.dot_dimension_numbers<[1], [0], [0], [1], [0, 0, 1, 1], [], []>} : vector<8x128xf32>, vector<128x128xf32>, vector<8x128xf32> -> vector<8x128xf32>
    %c0_3 = arith.constant 0 : index
    %c0_4 = arith.constant 0 : index
    %3 = vector.load %arg3[%c0_3, %c0_4] : memref<1x128xf32, #tpu.memory_space<vmem>>, vector<1x128xf32>
    %4 = vector.broadcast %3 : vector<1x128xf32> to vector<8x128xf32>
    %5 = arith.addf %2, %4 : vector<8x128xf32>
    %cst_5 = arith.constant 5.000000e-01 : f32
    %6 = vector.broadcast %cst_5 : f32 to vector<8x128xf32>
    %7 = arith.mulf %6, %5 : vector<8x128xf32>
    %cst_6 = arith.constant 0.707106769 : f32
    %8 = vector.broadcast %cst_6 : f32 to vector<8x128xf32>
    %9 = arith.mulf %5, %8 : vector<8x128xf32>
    %10 = math.erf %9 : vector<8x128xf32>
    %cst_7 = arith.constant 1.000000e+00 : f32
    %11 = vector.broadcast %cst_7 : f32 to vector<8x128xf32>
    %12 = arith.addf %11, %10 : vector<8x128xf32>
    %13 = arith.mulf %7, %12 : vector<8x128xf32>
    %c0_8 = arith.constant 0 : index
    %c0_9 = arith.constant 0 : index
    %14 = vector.load %arg4[%c0_8, %c0_9] : memref<128x128xf32, #tpu.memory_space<vmem>>, vector<128x128xf32>
    %cst_10 = arith.constant dense<0.000000e+00> : vector<8x128xf32>
    %15 = tpu.matmul %13, %14, %cst_10 {dimension_numbers = #tpu.dot_dimension_numbers<[1], [0], [0], [1], [0, 0, 1, 1], [], []>} : vector<8x128xf32>, vector<128x128xf32>, vector<8x128xf32> -> vector<8x128xf32>
    %c0_11 = arith.constant 0 : index
    %c0_12 = arith.constant 0 : index
    %16 = vector.load %arg5[%c0_11, %c0_12] : memref<1x128xf32, #tpu.memory_space<vmem>>, vector<1x128xf32>
    %17 = vector.broadcast %16 : vector<1x128xf32> to vector<8x128xf32>
    %18 = arith.addf %15, %17 : vector<8x128xf32>
    %cst_13 = arith.constant 5.000000e-01 : f32
    %19 = vector.broadcast %cst_13 : f32 to vector<8x128xf32>
    %20 = arith.mulf %19, %18 : vector<8x128xf32>
    %cst_14 = arith.constant 0.707106769 : f32
    %21 = vector.broadcast %cst_14 : f32 to vector<8x128xf32>
    %22 = arith.mulf %18, %21 : vector<8x128xf32>
    %23 = math.erf %22 : vector<8x128xf32>
    %cst_15 = arith.constant 1.000000e+00 : f32
    %24 = vector.broadcast %cst_15 : f32 to vector<8x128xf32>
    %25 = arith.addf %24, %23 : vector<8x128xf32>
    %26 = arith.mulf %20, %25 : vector<8x128xf32>
    %c0_16 = arith.constant 0 : index
    %c0_17 = arith.constant 0 : index
    %27 = vector.load %arg6[%c0_16, %c0_17] : memref<128x128xf32, #tpu.memory_space<vmem>>, vector<128x128xf32>
    %cst_18 = arith.constant dense<0.000000e+00> : vector<8x128xf32>
    %28 = tpu.matmul %26, %27, %cst_18 {dimension_numbers = #tpu.dot_dimension_numbers<[1], [0], [0], [1], [0, 0, 1, 1], [], []>} : vector<8x128xf32>, vector<128x128xf32>, vector<8x128xf32> -> vector<8x128xf32>
    %c0_19 = arith.constant 0 : index
    %c0_20 = arith.constant 0 : index
    %29 = vector.load %arg7[%c0_19, %c0_20] : memref<1x128xf32, #tpu.memory_space<vmem>>, vector<1x128xf32>
    %30 = vector.broadcast %29 : vector<1x128xf32> to vector<8x128xf32>
    %31 = arith.addf %28, %30 : vector<8x128xf32>
    %c0_21 = arith.constant 0 : index
    %c0_22 = arith.constant 0 : index
    %32 = vector.load %arg8[%c0_21, %c0_22] : memref<8x128xf32, #tpu.memory_space<vmem>>, vector<8x128xf32>
    tpu.vector_store %arg8[%c0_21, %c0_22], %31 {strides = array<i32>} : memref<8x128xf32, #tpu.memory_space<vmem>>, vector<8x128xf32>,
    return
  }
  func.func @transform_0(%arg0: i32) -> (i32, i32) {
    %c0_i32 = arith.constant 0 : i32
    %c0_i32_0 = arith.constant 0 : i32
    return %arg0, %c0_i32 : i32, i32
  }
  func.func @transform_1(%arg0: i32) -> (i32, i32) {
    %c0_i32 = arith.constant 0 : i32
    %c0_i32_0 = arith.constant 0 : i32
    %c0_i32_1 = arith.constant 0 : i32
    return %c0_i32, %c0_i32_0 : i32, i32
  }
  func.func @transform_2(%arg0: i32) -> (i32, i32) {
    %c0_i32 = arith.constant 0 : i32
    %c0_i32_0 = arith.constant 0 : i32
    %c0_i32_1 = arith.constant 0 : i32
    return %c0_i32, %c0_i32_0 : i32, i32
  }
  func.func @transform_3(%arg0: i32) -> (i32, i32) {
    %c0_i32 = arith.constant 0 : i32
    %c0_i32_0 = arith.constant 0 : i32
    %c0_i32_1 = arith.constant 0 : i32
    return %c0_i32, %c0_i32_0 : i32, i32
  }
  func.func @transform_4(%arg0: i32) -> (i32, i32) {
    %c0_i32 = arith.constant 0 : i32
    %c0_i32_0 = arith.constant 0 : i32
    %c0_i32_1 = arith.constant 0 : i32
    return %c0_i32, %c0_i32_0 : i32, i32
  }
  func.func @transform_5(%arg0: i32) -> (i32, i32) {
    %c0_i32 = arith.constant 0 : i32
    %c0_i32_0 = arith.constant 0 : i32
    %c0_i32_1 = arith.constant 0 : i32
    return %c0_i32, %c0_i32_0 : i32, i32
  }
  func.func @transform_6(%arg0: i32) -> (i32, i32) {
    %c0_i32 = arith.constant 0 : i32
    %c0_i32_0 = arith.constant 0 : i32
    %c0_i32_1 = arith.constant 0 : i32
    return %c0_i32, %c0_i32_0 : i32, i32
  }
  func.func @transform_7(%arg0: i32) -> (i32, i32) {
    %c0_i32 = arith.constant 0 : i32
    %c0_i32_0 = arith.constant 0 : i32
    return %arg0, %c0_i32 : i32, i32
  }
}

</mosaic_0001>

<llo_original>
// kernel: tpu_custom_call.1
$region0: #{tpu_custom_call.1}
  #allocation0 [shape = 'u32[]', space=smem, size = 0x4, offset = 0x4, fixed_abs, tag = 'smem constant byte address 0x4 - core index']
  #allocation1 [shape = 'u32[144,128]{1,0:T(1,128)}', space=vmem, size = 0x12000, scoped, tag = 'internal scratch']
  %s0 = inlined_call_operand.hbm [shape: f32[8,128], index: 0, kind: input, shape index: {}]
  %s1 = inlined_call_operand.hbm [shape: f32[128,128], index: 1, kind: input, shape index: {}]
  %s2 = inlined_call_operand.hbm [shape: f32[1,128], index: 2, kind: input, shape index: {}]
  %s3 = inlined_call_operand.hbm [shape: f32[128,128], index: 3, kind: input, shape index: {}]
  %s4 = inlined_call_operand.hbm [shape: f32[1,128], index: 4, kind: input, shape index: {}]
  %s5 = inlined_call_operand.hbm [shape: f32[128,128], index: 5, kind: input, shape index: {}]
  %s6 = inlined_call_operand.hbm [shape: f32[1,128], index: 6, kind: input, shape index: {}]
  %s7 = inlined_call_operand.hbm [shape: f32[8,128], index: 7, kind: output, shape index: {}]
  %s8 = sld [smem:[#allocation0]]
  $region66: #{tpu_custom_call.1} parent=0
    _
  %s10 = ssub.s32 1, %s8
  %s11 = scalar_select 0, %s10, %s8
  $region1: #{tpu_custom_call.1} parent=0
    #allocation2 [shape = 'u8[4096]{0}', space=vmem, size = 0x1000, scoped, tag = 'input window, operand 0, single buffered']
    #allocation3 [shape = 's32[1]{0}', space=sflag, size = 0x4, scoped, tag = 'scoped memory for tpu_custom_call.1']
    #allocation4 [shape = 's32[1]{0}', space=sflag, size = 0x4, scoped, tag = 'scoped memory for tpu_custom_call.1']
    #allocation5 [shape = 'u8[65536]{0}', space=vmem, size = 0x10000, scoped, tag = 'input window, operand 1, single buffered']
    #allocation6 [shape = 's32[1]{0}', space=sflag, size = 0x4, scoped, tag = 'scoped memory for tpu_custom_call.1']
    #allocation7 [shape = 'u8[512]{0}', space=vmem, size = 0x400, scoped, tag = 'input window, operand 2, single buffered']
    #allocation8 [shape = 'u8[65536]{0}', space=vmem, size = 0x10000, scoped, tag = 'input window, operand 3, single buffered']
    #allocation9 [shape = 's32[1]{0}', space=sflag, size = 0x4, scoped, tag = 'scoped memory for tpu_custom_call.1']
    #allocation10 [shape = 'u8[512]{0}', space=vmem, size = 0x400, scoped, tag = 'input window, operand 4, single buffered']
    #allocation11 [shape = 'u8[65536]{0}', space=vmem, size = 0x10000, scoped, tag = 'input window, operand 5, single buffered']
    #allocation12 [shape = 's32[1]{0}', space=sflag, size = 0x4, scoped, tag = 'scoped memory for tpu_custom_call.1']
    #allocation13 [shape = 'u8[512]{0}', space=vmem, size = 0x400, scoped, tag = 'input window, operand 6, single buffered']
    #allocation14 [shape = 'u8[4096]{0}', space=vmem, size = 0x1000, scoped, tag = 'output window, operand 0, single buffered']
    %12 = vsyncpa [#allocation3], 0
    %13 = vsyncpa [#allocation6], 0
    %14 = vsyncpa [#allocation9], 0
    %15 = vsyncpa [#allocation12], 0
    %16 = vsyncpa [#allocation4], 0
    // Predicated region
    $region2: #{tpu_custom_call.1} parent=1 // pred_check
      _
    $region3: #{tpu_custom_call.1} parent=1 // pred_check_branch
      %18 = sbr.rel (0) target = $region5
    $region4: #{tpu_custom_call.1} parent=1 // pred_region
      %s20 = ssub.s32 128, 128
      %21 = vsyncadd [#allocation3], %s20
      %s23 = sshll.u32 [#allocation2], 4
      %s24 = int_to_ptr.vmem [resolvable:$true] %s23
      %26 = dma.hbm_to_vmem [thread:$0]  %s0, 128, %s24, [#allocation3]
    $region5: #{tpu_custom_call.1} parent=1 // pred_fallthru
      _
    // Predicated region
    $region6: #{tpu_custom_call.1} parent=1 // pred_check
      _
    $region7: #{tpu_custom_call.1} parent=1 // pred_check_branch
      %28 = sbr.rel (0) target = $region9
    $region8: #{tpu_custom_call.1} parent=1 // pred_region
      %s30 = ssub.s32 2048, 2048
      %31 = vsyncadd [#allocation6], %s30
      %s32 = sshll.u32 [#allocation5], 4
      %s33 = int_to_ptr.vmem [resolvable:$true] %s32
      %38 = dma.hbm_to_vmem [thread:$0]  %s1, 2048, %s33, [#allocation6], 128, 128, 8
    $region9: #{tpu_custom_call.1} parent=1 // pred_fallthru
      _
    // Predicated region
    $region10: #{tpu_custom_call.1} parent=1 // pred_check
      _
    $region11: #{tpu_custom_call.1} parent=1 // pred_check_branch
      %40 = sbr.rel (0) target = $region13
    $region12: #{tpu_custom_call.1} parent=1 // pred_region
      %s42 = ssub.s32 16, 16
      %43 = vsyncadd [#allocation6], %s42
      %s45 = sshll.u32 [#allocation7], 4
      %s46 = int_to_ptr.vmem [resolvable:$true] %s45
      %48 = dma.hbm_to_vmem [thread:$0]  %s2, 16, %s46, [#allocation6]
    $region13: #{tpu_custom_call.1} parent=1 // pred_fallthru
      _
    // Predicated region
    $region14: #{tpu_custom_call.1} parent=1 // pred_check
      _
    $region15: #{tpu_custom_call.1} parent=1 // pred_check_branch
      %50 = sbr.rel (0) target = $region17
    $region16: #{tpu_custom_call.1} parent=1 // pred_region
      %s52 = ssub.s32 2048, 2048
      %53 = vsyncadd [#allocation9], %s52
      %s54 = sshll.u32 [#allocation8], 4
      %s55 = int_to_ptr.vmem [resolvable:$true] %s54
      %60 = dma.hbm_to_vmem [thread:$0]  %s3, 2048, %s55, [#allocation9], 128, 128, 8
    $region17: #{tpu_custom_call.1} parent=1 // pred_fallthru
      _
    // Predicated region
    $region18: #{tpu_custom_call.1} parent=1 // pred_check
      _
    $region19: #{tpu_custom_call.1} parent=1 // pred_check_branch
      %62 = sbr.rel (0) target = $region21
    $region20: #{tpu_custom_call.1} parent=1 // pred_region
      %s64 = ssub.s32 16, 16
      %65 = vsyncadd [#allocation9], %s64
      %s67 = sshll.u32 [#allocation10], 4
      %s68 = int_to_ptr.vmem [resolvable:$true] %s67
      %70 = dma.hbm_to_vmem [thread:$0]  %s4, 16, %s68, [#allocation9]
    $region21: #{tpu_custom_call.1} parent=1 // pred_fallthru
      _
    // Predicated region
    $region22: #{tpu_custom_call.1} parent=1 // pred_check
      _
    $region23: #{tpu_custom_call.1} parent=1 // pred_check_branch
      %72 = sbr.rel (0) target = $region25
    $region24: #{tpu_custom_call.1} parent=1 // pred_region
      %s74 = ssub.s32 2048, 2048
      %75 = vsyncadd [#allocation12], %s74
      %s76 = sshll.u32 [#allocation11], 4
      %s77 = int_to_ptr.vmem [resolvable:$true] %s76
      %82 = dma.hbm_to_vmem [thread:$0]  %s5, 2048, %s77, [#allocation12], 128, 128, 8
    $region25: #{tpu_custom_call.1} parent=1 // pred_fallthru
      _
    // Predicated region
    $region26: #{tpu_custom_call.1} parent=1 // pred_check
      _
    $region27: #{tpu_custom_call.1} parent=1 // pred_check_branch
      %84 = sbr.rel (0) target = $region29
    $region28: #{tpu_custom_call.1} parent=1 // pred_region
      %s86 = ssub.s32 16, 16
      %87 = vsyncadd [#allocation12], %s86
      %s89 = sshll.u32 [#allocation13], 4
      %s90 = int_to_ptr.vmem [resolvable:$true] %s89
      %92 = dma.hbm_to_vmem [thread:$0]  %s6, 16, %s90, [#allocation12]
    $region29: #{tpu_custom_call.1} parent=1 // pred_fallthru
      _
    // Predicated region
    $region30: #{tpu_custom_call.1} parent=1 // pred_check
      _
    $region31: #{tpu_custom_call.1} parent=1 // pred_check_branch
      %94 = sbr.rel (0) target = $region33
    $region32: #{tpu_custom_call.1} parent=1 // pred_region
      %95 = dma.done [#allocation3], 128
    $region33: #{tpu_custom_call.1} parent=1 // pred_fallthru
      _
    // Predicated region
    $region34: #{tpu_custom_call.1} parent=1 // pred_check
      _
    $region35: #{tpu_custom_call.1} parent=1 // pred_check_branch
      %97 = sbr.rel (0) target = $region37
    $region36: #{tpu_custom_call.1} parent=1 // pred_region
      %98 = dma.done [#allocation6], 2048
    $region37: #{tpu_custom_call.1} parent=1 // pred_fallthru
      _
    // Predicated region
    $region38: #{tpu_custom_call.1} parent=1 // pred_check
      _
    $region39: #{tpu_custom_call.1} parent=1 // pred_check_branch
      %100 = sbr.rel (0) target = $region41
    $region40: #{tpu_custom_call.1} parent=1 // pred_region
      %101 = dma.done [#allocation6], 16
    $region41: #{tpu_custom_call.1} parent=1 // pred_fallthru
      _
    // Predicated region
    $region42: #{tpu_custom_call.1} parent=1 // pred_check
      _
    $region43: #{tpu_custom_call.1} parent=1 // pred_check_branch
      %103 = sbr.rel (0) target = $region45
    $region44: #{tpu_custom_call.1} parent=1 // pred_region
      %104 = dma.done [#allocation9], 2048
    $region45: #{tpu_custom_call.1} parent=1 // pred_fallthru
      _
    // Predicated region
    $region46: #{tpu_custom_call.1} parent=1 // pred_check
      _
    $region47: #{tpu_custom_call.1} parent=1 // pred_check_branch
      %106 = sbr.rel (0) target = $region49
    $region48: #{tpu_custom_call.1} parent=1 // pred_region
      %107 = dma.done [#allocation9], 16
    $region49: #{tpu_custom_call.1} parent=1 // pred_fallthru
      _
    // Predicated region
    $region50: #{tpu_custom_call.1} parent=1 // pred_check
      _
    $region51: #{tpu_custom_call.1} parent=1 // pred_check_branch
      %109 = sbr.rel (0) target = $region53
    $region52: #{tpu_custom_call.1} parent=1 // pred_region
      %110 = dma.done [#allocation12], 2048
    $region53: #{tpu_custom_call.1} parent=1 // pred_fallthru
      _
    // Predicated region
    $region54: #{tpu_custom_call.1} parent=1 // pred_check
      _
    $region55: #{tpu_custom_call.1} parent=1 // pred_check_branch
      %112 = sbr.rel (0) target = $region57
    $region56: #{tpu_custom_call.1} parent=1 // pred_region
      %113 = dma.done [#allocation12], 16
    $region57: #{tpu_custom_call.1} parent=1 // pred_fallthru
      _
    %v114 = vld [vmem:[#allocation2] sm:$0xff]
    %v115 = vld [vmem:[#allocation5] sm:$0xff]
    %v116 = vld [vmem:[#allocation5 + $0x8] sm:$0xff]
    %v117 = vld [vmem:[#allocation5 + $0x10] sm:$0xff]
    %v118 = vld [vmem:[#allocation5 + $0x18] sm:$0xff]
    %v119 = vld [vmem:[#allocation5 + $0x20] sm:$0xff]
    %v120 = vld [vmem:[#allocation5 + $0x28] sm:$0xff]
    %v121 = vld [vmem:[#allocation5 + $0x30] sm:$0xff]
    %v122 = vld [vmem:[#allocation5 + $0x38] sm:$0xff]
    %v123 = vld [vmem:[#allocation5 + $0x40] sm:$0xff]
    %v124 = vld [vmem:[#allocation5 + $0x48] sm:$0xff]
    %v125 = vld [vmem:[#allocation5 + $0x50] sm:$0xff]
    %v126 = vld [vmem:[#allocation5 + $0x58] sm:$0xff]
    %v127 = vld [vmem:[#allocation5 + $0x60] sm:$0xff]
    %v128 = vld [vmem:[#allocation5 + $0x68] sm:$0xff]
    %v129 = vld [vmem:[#allocation5 + $0x70] sm:$0xff]
    %v130 = vld [vmem:[#allocation5 + $0x78] sm:$0xff]
    %v131 = vld [vmem:[#allocation7] sm:$0x1]
    %v133 = vlaneseq
    %v134 = vshrl.u32 %v133, 7
    %v135 = vsub.s32 0, %v134
    %v136 = vrot.slane %v131, %v135
    %138 = vmatprep.subr.mxu0 0.0
    %139 = vmatpush1.msra.mxu0 %v115
    %140 = vmatprep.subr.mxu0 0.0
    %141 = vmatpush1.msra.mxu0 %v116
    %142 = vmatprep.subr.mxu0 0.0
    %143 = vmatpush1.msra.mxu0 %v117
    %144 = vmatprep.subr.mxu0 0.0
    %145 = vmatpush1.msra.mxu0 %v118
    %146 = vmatprep.subr.mxu0 0.0
    %147 = vmatpush1.msra.mxu0 %v119
    %148 = vmatprep.subr.mxu0 0.0
    %149 = vmatpush1.msra.mxu0 %v120
    %150 = vmatprep.subr.mxu0 0.0
    %151 = vmatpush1.msra.mxu0 %v121
    %152 = vmatprep.subr.mxu0 0.0
    %153 = vmatpush1.msra.mxu0 %v122
    %154 = vmatprep.subr.mxu0 0.0
    %155 = vmatpush1.msra.mxu0 %v123
    %156 = vmatprep.subr.mxu0 0.0
    %157 = vmatpush1.msra.mxu0 %v124
    %158 = vmatprep.subr.mxu0 0.0
    %159 = vmatpush1.msra.mxu0 %v125
    %160 = vmatprep.subr.mxu0 0.0
    %161 = vmatpush1.msra.mxu0 %v126
    %162 = vmatprep.subr.mxu0 0.0
    %163 = vmatpush1.msra.mxu0 %v127
    %164 = vmatprep.subr.mxu0 0.0
    %165 = vmatpush1.msra.mxu0 %v128
    %166 = vmatprep.subr.mxu0 0.0
    %167 = vmatpush1.msra.mxu0 %v129
    %168 = vmatprep.subr.mxu0 0.0
    %169 = vmatpush1.msra.mxu0 %v130
    %170 = vmatprep.subr.mxu0 0.0
    %171 = vmatpush1.msra.mxu0 0.0
    %172 = vmatprep.subr.mxu0 0.0
    %173 = vmatpush1.msra.mxu0 0.0
    %174 = vmatprep.subr.mxu0 0.0
    %175 = vmatpush1.msra.mxu0 0.0
    %176 = vmatprep.subr.mxu0 0.0
    %177 = vmatpush1.msra.mxu0 0.0
    %178 = vmatprep.subr.mxu0 0.0
    %179 = vmatpush1.msra.mxu0 0.0
    %180 = vmatprep.subr.mxu0 0.0
    %181 = vmatpush1.msra.mxu0 0.0
    %182 = vmatprep.subr.mxu0 0.0
    %183 = vmatpush1.msra.mxu0 0.0
    %184 = vmatprep.subr.mxu0 0.0
    %185 = vmatpush1.msra.mxu0 0.0
    %186 = vmatprep.subr.mxu0 0.0
    %187 = vmatpush1.msra.mxu0 0.0
    %188 = vmatprep.subr.mxu0 0.0
    %189 = vmatpush1.msra.mxu0 0.0
    %190 = vmatprep.subr.mxu0 0.0
    %191 = vmatpush1.msra.mxu0 0.0
    %192 = vmatprep.subr.mxu0 0.0
    %193 = vmatpush1.msra.mxu0 0.0
    %194 = vmatprep.subr.mxu0 0.0
    %195 = vmatpush1.msra.mxu0 0.0
    %196 = vmatprep.subr.mxu0 0.0
    %197 = vmatpush1.msra.mxu0 0.0
    %198 = vmatprep.subr.mxu0 0.0
    %199 = vmatpush1.msra.mxu0 0.0
    %200 = vmatprep.subr.mxu0 0.0
    %201 = vmatpush1.msra.mxu0 0.0
    %202 = vmatprep.mubr.f32.mxu0 0.0
    %203 = vmatmul.mubr.f32.gmra.mrb[0].mxu0 %v114
    %v204 = vpop.f32.mrb[0].mxu0
    %v205 = vadd.f32 %v136, %v204
    %v206 = vpop.f32.mrb[0].mxu0
    %207 = vdwg.mxu0
    %v208 = vmul.f32 %v205, 0.5
    %v209 = vmul.f32 %v205, 0.70710677
    %v210 = verf.f32.pop %v209
    %v211 = vadd.f32 %v210, 1.0
    %v212 = vmul.f32 %v208, %v211
    %v213 = vld [vmem:[#allocation8] sm:$0xff]
    %v214 = vld [vmem:[#allocation8 + $0x8] sm:$0xff]
    %v215 = vld [vmem:[#allocation8 + $0x10] sm:$0xff]
    %v216 = vld [vmem:[#allocation8 + $0x18] sm:$0xff]
    %v217 = vld [vmem:[#allocation8 + $0x20] sm:$0xff]
    %v218 = vld [vmem:[#allocation8 + $0x28] sm:$0xff]
    %v219 = vld [vmem:[#allocation8 + $0x30] sm:$0xff]
    %v220 = vld [vmem:[#allocation8 + $0x38] sm:$0xff]
    %v221 = vld [vmem:[#allocation8 + $0x40] sm:$0xff]
    %v222 = vld [vmem:[#allocation8 + $0x48] sm:$0xff]
    %v223 = vld [vmem:[#allocation8 + $0x50] sm:$0xff]
    %v224 = vld [vmem:[#allocation8 + $0x58] sm:$0xff]
    %v225 = vld [vmem:[#allocation8 + $0x60] sm:$0xff]
    %v226 = vld [vmem:[#allocation8 + $0x68] sm:$0xff]
    %v227 = vld [vmem:[#allocation8 + $0x70] sm:$0xff]
    %v228 = vld [vmem:[#allocation8 + $0x78] sm:$0xff]
    %v229 = vld [vmem:[#allocation10] sm:$0x1]
    %v231 = vlaneseq
    %v232 = vshrl.u32 %v231, 7
    %v233 = vsub.s32 0, %v232
    %v234 = vrot.slane %v229, %v233
    %236 = vmatprep.subr.mxu0 0.0
    %237 = vmatpush1.msra.mxu0 %v213
    %238 = vmatprep.subr.mxu0 0.0
    %239 = vmatpush1.msra.mxu0 %v214
    %240 = vmatprep.subr.mxu0 0.0
    %241 = vmatpush1.msra.mxu0 %v215
    %242 = vmatprep.subr.mxu0 0.0
    %243 = vmatpush1.msra.mxu0 %v216
    %244 = vmatprep.subr.mxu0 0.0
    %245 = vmatpush1.msra.mxu0 %v217
    %246 = vmatprep.subr.mxu0 0.0
    %247 = vmatpush1.msra.mxu0 %v218
    %248 = vmatprep.subr.mxu0 0.0
    %249 = vmatpush1.msra.mxu0 %v219
    %250 = vmatprep.subr.mxu0 0.0
    %251 = vmatpush1.msra.mxu0 %v220
    %252 = vmatprep.subr.mxu0 0.0
    %253 = vmatpush1.msra.mxu0 %v221
    %254 = vmatprep.subr.mxu0 0.0
    %255 = vmatpush1.msra.mxu0 %v222
    %256 = vmatprep.subr.mxu0 0.0
    %257 = vmatpush1.msra.mxu0 %v223
    %258 = vmatprep.subr.mxu0 0.0
    %259 = vmatpush1.msra.mxu0 %v224
    %260 = vmatprep.subr.mxu0 0.0
    %261 = vmatpush1.msra.mxu0 %v225
    %262 = vmatprep.subr.mxu0 0.0
    %263 = vmatpush1.msra.mxu0 %v226
    %264 = vmatprep.subr.mxu0 0.0
    %265 = vmatpush1.msra.mxu0 %v227
    %266 = vmatprep.subr.mxu0 0.0
    %267 = vmatpush1.msra.mxu0 %v228
    %268 = vmatprep.subr.mxu0 0.0
    %269 = vmatpush1.msra.mxu0 0.0
    %270 = vmatprep.subr.mxu0 0.0
    %271 = vmatpush1.msra.mxu0 0.0
    %272 = vmatprep.subr.mxu0 0.0
    %273 = vmatpush1.msra.mxu0 0.0
    %274 = vmatprep.subr.mxu0 0.0
    %275 = vmatpush1.msra.mxu0 0.0
    %276 = vmatprep.subr.mxu0 0.0
    %277 = vmatpush1.msra.mxu0 0.0
    %278 = vmatprep.subr.mxu0 0.0
    %279 = vmatpush1.msra.mxu0 0.0
    %280 = vmatprep.subr.mxu0 0.0
    %281 = vmatpush1.msra.mxu0 0.0
    %282 = vmatprep.subr.mxu0 0.0
    %283 = vmatpush1.msra.mxu0 0.0
    %284 = vmatprep.subr.mxu0 0.0
    %285 = vmatpush1.msra.mxu0 0.0
    %286 = vmatprep.subr.mxu0 0.0
    %287 = vmatpush1.msra.mxu0 0.0
    %288 = vmatprep.subr.mxu0 0.0
    %289 = vmatpush1.msra.mxu0 0.0
    %290 = vmatprep.subr.mxu0 0.0
    %291 = vmatpush1.msra.mxu0 0.0
    %292 = vmatprep.subr.mxu0 0.0
    %293 = vmatpush1.msra.mxu0 0.0
    %294 = vmatprep.subr.mxu0 0.0
    %295 = vmatpush1.msra.mxu0 0.0
    %296 = vmatprep.subr.mxu0 0.0
    %297 = vmatpush1.msra.mxu0 0.0
    %298 = vmatprep.subr.mxu0 0.0
    %299 = vmatpush1.msra.mxu0 0.0
    %300 = vmatprep.mubr.f32.mxu0 0.0
    %301 = vmatmul.mubr.f32.gmra.mrb[0].mxu0 %v212
    %v302 = vpop.f32.mrb[0].mxu0
    %v303 = vadd.f32 %v234, %v302
    %v304 = vpop.f32.mrb[0].mxu0
    %305 = vdwg.mxu0
    %v306 = vmul.f32 %v303, 0.5
    %v307 = vmul.f32 %v303, 0.70710677
    %v308 = verf.f32.pop %v307
    %v309 = vadd.f32 %v308, 1.0
    %v310 = vmul.f32 %v306, %v309
    %v311 = vld [vmem:[#allocation11] sm:$0xff]
    %v312 = vld [vmem:[#allocation11 + $0x8] sm:$0xff]
    %v313 = vld [vmem:[#allocation11 + $0x10] sm:$0xff]
    %v314 = vld [vmem:[#allocation11 + $0x18] sm:$0xff]
    %v315 = vld [vmem:[#allocation11 + $0x20] sm:$0xff]
    %v316 = vld [vmem:[#allocation11 + $0x28] sm:$0xff]
    %v317 = vld [vmem:[#allocation11 + $0x30] sm:$0xff]
    %v318 = vld [vmem:[#allocation11 + $0x38] sm:$0xff]
    %v319 = vld [vmem:[#allocation11 + $0x40] sm:$0xff]
    %v320 = vld [vmem:[#allocation11 + $0x48] sm:$0xff]
    %v321 = vld [vmem:[#allocation11 + $0x50] sm:$0xff]
    %v322 = vld [vmem:[#allocation11 + $0x58] sm:$0xff]
    %v323 = vld [vmem:[#allocation11 + $0x60] sm:$0xff]
    %v324 = vld [vmem:[#allocation11 + $0x68] sm:$0xff]
    %v325 = vld [vmem:[#allocation11 + $0x70] sm:$0xff]
    %v326 = vld [vmem:[#allocation11 + $0x78] sm:$0xff]
    %v327 = vld [vmem:[#allocation13] sm:$0x1]
    %v329 = vlaneseq
    %v330 = vshrl.u32 %v329, 7
    %v331 = vsub.s32 0, %v330
    %v332 = vrot.slane %v327, %v331
    %334 = vmatprep.subr.mxu0 0.0
    %335 = vmatpush1.msra.mxu0 %v311
    %336 = vmatprep.subr.mxu0 0.0
    %337 = vmatpush1.msra.mxu0 %v312
    %338 = vmatprep.subr.mxu0 0.0
    %339 = vmatpush1.msra.mxu0 %v313
    %340 = vmatprep.subr.mxu0 0.0
    %341 = vmatpush1.msra.mxu0 %v314
    %342 = vmatprep.subr.mxu0 0.0
    %343 = vmatpush1.msra.mxu0 %v315
    %344 = vmatprep.subr.mxu0 0.0
    %345 = vmatpush1.msra.mxu0 %v316
    %346 = vmatprep.subr.mxu0 0.0
    %347 = vmatpush1.msra.mxu0 %v317
    %348 = vmatprep.subr.mxu0 0.0
    %349 = vmatpush1.msra.mxu0 %v318
    %350 = vmatprep.subr.mxu0 0.0
    %351 = vmatpush1.msra.mxu0 %v319
    %352 = vmatprep.subr.mxu0 0.0
    %353 = vmatpush1.msra.mxu0 %v320
    %354 = vmatprep.subr.mxu0 0.0
    %355 = vmatpush1.msra.mxu0 %v321
    %356 = vmatprep.subr.mxu0 0.0
    %357 = vmatpush1.msra.mxu0 %v322
    %358 = vmatprep.subr.mxu0 0.0
    %359 = vmatpush1.msra.mxu0 %v323
    %360 = vmatprep.subr.mxu0 0.0
    %361 = vmatpush1.msra.mxu0 %v324
    %362 = vmatprep.subr.mxu0 0.0
    %363 = vmatpush1.msra.mxu0 %v325
    %364 = vmatprep.subr.mxu0 0.0
    %365 = vmatpush1.msra.mxu0 %v326
    %366 = vmatprep.subr.mxu0 0.0
    %367 = vmatpush1.msra.mxu0 0.0
    %368 = vmatprep.subr.mxu0 0.0
    %369 = vmatpush1.msra.mxu0 0.0
    %370 = vmatprep.subr.mxu0 0.0
    %371 = vmatpush1.msra.mxu0 0.0
    %372 = vmatprep.subr.mxu0 0.0
    %373 = vmatpush1.msra.mxu0 0.0
    %374 = vmatprep.subr.mxu0 0.0
    %375 = vmatpush1.msra.mxu0 0.0
    %376 = vmatprep.subr.mxu0 0.0
    %377 = vmatpush1.msra.mxu0 0.0
    %378 = vmatprep.subr.mxu0 0.0
    %379 = vmatpush1.msra.mxu0 0.0
    %380 = vmatprep.subr.mxu0 0.0
    %381 = vmatpush1.msra.mxu0 0.0
    %382 = vmatprep.subr.mxu0 0.0
    %383 = vmatpush1.msra.mxu0 0.0
    %384 = vmatprep.subr.mxu0 0.0
    %385 = vmatpush1.msra.mxu0 0.0
    %386 = vmatprep.subr.mxu0 0.0
    %387 = vmatpush1.msra.mxu0 0.0
    %388 = vmatprep.subr.mxu0 0.0
    %389 = vmatpush1.msra.mxu0 0.0
    %390 = vmatprep.subr.mxu0 0.0
    %391 = vmatpush1.msra.mxu0 0.0
    %392 = vmatprep.subr.mxu0 0.0
    %393 = vmatpush1.msra.mxu0 0.0
    %394 = vmatprep.subr.mxu0 0.0
    %395 = vmatpush1.msra.mxu0 0.0
    %396 = vmatprep.subr.mxu0 0.0
    %397 = vmatpush1.msra.mxu0 0.0
    %398 = vmatprep.mubr.f32.mxu0 0.0
    %399 = vmatmul.mubr.f32.gmra.mrb[0].mxu0 %v310
    %v400 = vpop.f32.mrb[0].mxu0
    %v401 = vadd.f32 %v332, %v400
    %v402 = vpop.f32.mrb[0].mxu0
    %403 = vdwg.mxu0
    %404 = vst [vmem:[#allocation14] sm:$0xff] %v401
    // Predicated region
    $region58: #{tpu_custom_call.1} parent=1 // pred_check
      _
    $region59: #{tpu_custom_call.1} parent=1 // pred_check_branch
      %406 = sbr.rel (0) target = $region61
    $region60: #{tpu_custom_call.1} parent=1 // pred_region
      %s408 = ssub.s32 128, 128
      %409 = vsyncadd [#allocation4], %s408
      %s411 = sshll.u32 [#allocation14], 4
      %s412 = int_to_ptr.vmem [resolvable:$true] %s411
      %414 = dma.vmem_to_hbm [thread:$0]  %s412, 128, %s7, [#allocation4]
    $region61: #{tpu_custom_call.1} parent=1 // pred_fallthru
      _
    // Predicated region
    $region62: #{tpu_custom_call.1} parent=1 // pred_check
      _
    $region63: #{tpu_custom_call.1} parent=1 // pred_check_branch
      %416 = sbr.rel (0) target = $region65
    $region64: #{tpu_custom_call.1} parent=1 // pred_region
      %417 = dma.done [#allocation4], 128
    $region65: #{tpu_custom_call.1} parent=1 // pred_fallthru
      _
    %418 = vsyncpa [#allocation3], 1
    %419 = vsyncpa [#allocation6], 1
    %420 = vsyncpa [#allocation9], 1
    %421 = vsyncpa [#allocation12], 1
    %422 = vsyncpa [#allocation4], 1

// kernel: tpu_custom_call.1
$region0: #{tpu_custom_call.1}
  #allocation0 [shape = 'u32[]', space=smem, size = 0x4, offset = 0x4, fixed_abs, tag = 'smem constant byte address 0x4 - core index']
  #allocation1 [shape = 'u32[144,128]{1,0:T(1,128)}', space=vmem, size = 0x12000, scoped, tag = 'internal scratch']
  %s0 = inlined_call_operand.hbm [shape: f32[8,128], index: 0, kind: input, shape index: {}]
  %s1 = inlined_call_operand.hbm [shape: f32[128,128], index: 1, kind: input, shape index: {}]
  %s2 = inlined_call_operand.hbm [shape: f32[1,128], index: 2, kind: input, shape index: {}]
  %s3 = inlined_call_operand.hbm [shape: f32[128,128], index: 3, kind: input, shape index: {}]
  %s4 = inlined_call_operand.hbm [shape: f32[1,128], index: 4, kind: input, shape index: {}]
  %s5 = inlined_call_operand.hbm [shape: f32[128,128], index: 5, kind: input, shape index: {}]
  %s6 = inlined_call_operand.hbm [shape: f32[1,128], index: 6, kind: input, shape index: {}]
  %s7 = inlined_call_operand.hbm [shape: f32[8,128], index: 7, kind: output, shape index: {}]
  %s8 = sld [smem:[#allocation0]]
  $region66: #{tpu_custom_call.1} parent=0
    _
  %s10 = ssub.s32 1, %s8
  %s11 = scalar_select 0, %s10, %s8
  $region1: #{tpu_custom_call.1} parent=0
    #allocation2 [shape = 'u8[4096]{0}', space=vmem, size = 0x1000, scoped, tag = 'input window, operand 0, single buffered']
    #allocation3 [shape = 's32[1]{0}', space=sflag, size = 0x4, scoped, tag = 'scoped memory for tpu_custom_call.1']
    #allocation4 [shape = 's32[1]{0}', space=sflag, size = 0x4, scoped, tag = 'scoped memory for tpu_custom_call.1']
    #allocation5 [shape = 'u8[65536]{0}', space=vmem, size = 0x10000, scoped, tag = 'input window, operand 1, single buffered']
    #allocation6 [shape = 's32[1]{0}', space=sflag, size = 0x4, scoped, tag = 'scoped memory for tpu_custom_call.1']
    #allocation7 [shape = 'u8[512]{0}', space=vmem, size = 0x400, scoped, tag = 'input window, operand 2, single buffered']
    #allocation8 [shape = 'u8[65536]{0}', space=vmem, size = 0x10000, scoped, tag = 'input window, operand 3, single buffered']
    #allocation9 [shape = 's32[1]{0}', space=sflag, size = 0x4, scoped, tag = 'scoped memory for tpu_custom_call.1']
    #allocation10 [shape = 'u8[512]{0}', space=vmem, size = 0x400, scoped, tag = 'input window, operand 4, single buffered']
    #allocation11 [shape = 'u8[65536]{0}', space=vmem, size = 0x10000, scoped, tag = 'input window, operand 5, single buffered']
    #allocation12 [shape = 's32[1]{0}', space=sflag, size = 0x4, scoped, tag = 'scoped memory for tpu_custom_call.1']
    #allocation13 [shape = 'u8[512]{0}', space=vmem, size = 0x400, scoped, tag = 'input window, operand 6, single buffered']
    #allocation14 [shape = 'u8[4096]{0}', space=vmem, size = 0x1000, scoped, tag = 'output window, operand 0, single buffered']
    %12 = vsyncpa [#allocation3], 0
    %13 = vsyncpa [#allocation6], 0
    %14 = vsyncpa [#allocation9], 0
    %15 = vsyncpa [#allocation12], 0
    %16 = vsyncpa [#allocation4], 0
    // Predicated region
    $region2: #{tpu_custom_call.1} parent=1 // pred_check
      _
    $region3: #{tpu_custom_call.1} parent=1 // pred_check_branch
      %18 = sbr.rel (0) target = $region5
    $region4: #{tpu_custom_call.1} parent=1 // pred_region
      %s20 = ssub.s32 128, 128
      %21 = vsyncadd [#allocation3], %s20
      %s23 = sshll.u32 [#allocation2], 4
      %s24 = int_to_ptr.vmem [resolvable:$true] %s23
      %26 = dma.hbm_to_vmem [thread:$0]  %s0, 128, %s24, [#allocation3]
    $region5: #{tpu_custom_call.1} parent=1 // pred_fallthru
      _
    // Predicated region
    $region6: #{tpu_custom_call.1} parent=1 // pred_check
      _
    $region7: #{tpu_custom_call.1} parent=1 // pred_check_branch
      %28 = sbr.rel (0) target = $region9
    $region8: #{tpu_custom_call.1} parent=1 // pred_region
      %s30 = ssub.s32 2048, 2048
      %31 = vsyncadd [#allocation6], %s30
      %s32 = sshll.u32 [#allocation5], 4
      %s33 = int_to_ptr.vmem [resolvable:$true] %s32
      %38 = dma.hbm_to_vmem [thread:$0]  %s1, 2048, %s33, [#allocation6], 128, 128, 8
    $region9: #{tpu_custom_call.1} parent=1 // pred_fallthru
      _
    // Predicated region
    $region10: #{tpu_custom_call.1} parent=1 // pred_check
      _
    $region11: #{tpu_custom_call.1} parent=1 // pred_check_branch
      %40 = sbr.rel (0) target = $region13
    $region12: #{tpu_custom_call.1} parent=1 // pred_region
      %s42 = ssub.s32 16, 16
      %43 = vsyncadd [#allocation6], %s42
      %s45 = sshll.u32 [#allocation7], 4
      %s46 = int_to_ptr.vmem [resolvable:$true] %s45
      %48 = dma.hbm_to_vmem [thread:$0]  %s2, 16, %s46, [#allocation6]
    $region13: #{tpu_custom_call.1} parent=1 // pred_fallthru
      _
    // Predicated region
    $region14: #{tpu_custom_call.1} parent=1 // pred_check
      _
    $region15: #{tpu_custom_call.1} parent=1 // pred_check_branch
      %50 = sbr.rel (0) target = $region17
    $region16: #{tpu_custom_call.1} parent=1 // pred_region
      %s52 = ssub.s32 2048, 2048
      %53 = vsyncadd [#allocation9], %s52
      %s54 = sshll.u32 [#allocation8], 4
      %s55 = int_to_ptr.vmem [resolvable:$true] %s54
      %60 = dma.hbm_to_vmem [thread:$0]  %s3, 2048, %s55, [#allocation9], 128, 128, 8
    $region17: #{tpu_custom_call.1} parent=1 // pred_fallthru
      _
    // Predicated region
    $region18: #{tpu_custom_call.1} parent=1 // pred_check
      _
    $region19: #{tpu_custom_call.1} parent=1 // pred_check_branch
      %62 = sbr.rel (0) target = $region21
    $region20: #{tpu_custom_call.1} parent=1 // pred_region
      %s64 = ssub.s32 16, 16
      %65 = vsyncadd [#allocation9], %s64
      %s67 = sshll.u32 [#allocation10], 4
      %s68 = int_to_ptr.vmem [resolvable:$true] %s67
      %70 = dma.hbm_to_vmem [thread:$0]  %s4, 16, %s68, [#allocation9]
    $region21: #{tpu_custom_call.1} parent=1 // pred_fallthru
      _
    // Predicated region
    $region22: #{tpu_custom_call.1} parent=1 // pred_check
      _
    $region23: #{tpu_custom_call.1} parent=1 // pred_check_branch
      %72 = sbr.rel (0) target = $region25
    $region24: #{tpu_custom_call.1} parent=1 // pred_region
      %s74 = ssub.s32 2048, 2048
      %75 = vsyncadd [#allocation12], %s74
      %s76 = sshll.u32 [#allocation11], 4
      %s77 = int_to_ptr.vmem [resolvable:$true] %s76
      %82 = dma.hbm_to_vmem [thread:$0]  %s5, 2048, %s77, [#allocation12], 128, 128, 8
    $region25: #{tpu_custom_call.1} parent=1 // pred_fallthru
      _
    // Predicated region
    $region26: #{tpu_custom_call.1} parent=1 // pred_check
      _
    $region27: #{tpu_custom_call.1} parent=1 // pred_check_branch
      %84 = sbr.rel (0) target = $region29
    $region28: #{tpu_custom_call.1} parent=1 // pred_region
      %s86 = ssub.s32 16, 16
      %87 = vsyncadd [#allocation12], %s86
      %s89 = sshll.u32 [#allocation13], 4
      %s90 = int_to_ptr.vmem [resolvable:$true] %s89
      %92 = dma.hbm_to_vmem [thread:$0]  %s6, 16, %s90, [#allocation12]
    $region29: #{tpu_custom_call.1} parent=1 // pred_fallthru
      _
    // Predicated region
    $region30: #{tpu_custom_call.1} parent=1 // pred_check
      _
    $region31: #{tpu_custom_call.1} parent=1 // pred_check_branch
      %94 = sbr.rel (0) target = $region33
    $region32: #{tpu_custom_call.1} parent=1 // pred_region
      %95 = dma.done [#allocation3], 128
    $region33: #{tpu_custom_call.1} parent=1 // pred_fallthru
      _
    // Predicated region
    $region34: #{tpu_custom_call.1} parent=1 // pred_check
      _
    $region35: #{tpu_custom_call.1} parent=1 // pred_check_branch
      %97 = sbr.rel (0) target = $region37
    $region36: #{tpu_custom_call.1} parent=1 // pred_region
      %98 = dma.done [#allocation6], 2048
    $region37: #{tpu_custom_call.1} parent=1 // pred_fallthru
      _
    // Predicated region
    $region38: #{tpu_custom_call.1} parent=1 // pred_check
      _
    $region39: #{tpu_custom_call.1} parent=1 // pred_check_branch
      %100 = sbr.rel (0) target = $region41
    $region40: #{tpu_custom_call.1} parent=1 // pred_region
      %101 = dma.done [#allocation6], 16
    $region41: #{tpu_custom_call.1} parent=1 // pred_fallthru
      _
    // Predicated region
    $region42: #{tpu_custom_call.1} parent=1 // pred_check
      _
    $region43: #{tpu_custom_call.1} parent=1 // pred_check_branch
      %103 = sbr.rel (0) target = $region45
    $region44: #{tpu_custom_call.1} parent=1 // pred_region
      %104 = dma.done [#allocation9], 2048
    $region45: #{tpu_custom_call.1} parent=1 // pred_fallthru
      _
    // Predicated region
    $region46: #{tpu_custom_call.1} parent=1 // pred_check
      _
    $region47: #{tpu_custom_call.1} parent=1 // pred_check_branch
      %106 = sbr.rel (0) target = $region49
    $region48: #{tpu_custom_call.1} parent=1 // pred_region
      %107 = dma.done [#allocation9], 16
    $region49: #{tpu_custom_call.1} parent=1 // pred_fallthru
      _
    // Predicated region
    $region50: #{tpu_custom_call.1} parent=1 // pred_check
      _
    $region51: #{tpu_custom_call.1} parent=1 // pred_check_branch
      %109 = sbr.rel (0) target = $region53
    $region52: #{tpu_custom_call.1} parent=1 // pred_region
      %110 = dma.done [#allocation12], 2048
    $region53: #{tpu_custom_call.1} parent=1 // pred_fallthru
      _
    // Predicated region
    $region54: #{tpu_custom_call.1} parent=1 // pred_check
      _
    $region55: #{tpu_custom_call.1} parent=1 // pred_check_branch
      %112 = sbr.rel (0) target = $region57
    $region56: #{tpu_custom_call.1} parent=1 // pred_region
      %113 = dma.done [#allocation12], 16
    $region57: #{tpu_custom_call.1} parent=1 // pred_fallthru
      _
    %v114 = vld [vmem:[#allocation2] sm:$0xff]
    %v115 = vld [vmem:[#allocation5] sm:$0xff]
    %v116 = vld [vmem:[#allocation5 + $0x8] sm:$0xff]
    %v117 = vld [vmem:[#allocation5 + $0x10] sm:$0xff]
    %v118 = vld [vmem:[#allocation5 + $0x18] sm:$0xff]
    %v119 = vld [vmem:[#allocation5 + $0x20] sm:$0xff]
    %v120 = vld [vmem:[#allocation5 + $0x28] sm:$0xff]
    %v121 = vld [vmem:[#allocation5 + $0x30] sm:$0xff]
    %v122 = vld [vmem:[#allocation5 + $0x38] sm:$0xff]
    %v123 = vld [vmem:[#allocation5 + $0x40] sm:$0xff]
    %v124 = vld [vmem:[#allocation5 + $0x48] sm:$0xff]
    %v125 = vld [vmem:[#allocation5 + $0x50] sm:$0xff]
    %v126 = vld [vmem:[#allocation5 + $0x58] sm:$0xff]
    %v127 = vld [vmem:[#allocation5 + $0x60] sm:$0xff]
    %v128 = vld [vmem:[#allocation5 + $0x68] sm:$0xff]
    %v129 = vld [vmem:[#allocation5 + $0x70] sm:$0xff]
    %v130 = vld [vmem:[#allocation5 + $0x78] sm:$0xff]
    %v131 = vld [vmem:[#allocation7] sm:$0x1]
    %v133 = vlaneseq
    %v134 = vshrl.u32 %v133, 7
    %v135 = vsub.s32 0, %v134
    %v136 = vrot.slane %v131, %v135
    %138 = vmatprep.subr.mxu0 0.0
    %139 = vmatpush1.msra.mxu0 %v115
    %140 = vmatprep.subr.mxu0 0.0
    %141 = vmatpush1.msra.mxu0 %v116
    %142 = vmatprep.subr.mxu0 0.0
    %143 = vmatpush1.msra.mxu0 %v117
    %144 = vmatprep.subr.mxu0 0.0
    %145 = vmatpush1.msra.mxu0 %v118
    %146 = vmatprep.subr.mxu0 0.0
    %147 = vmatpush1.msra.mxu0 %v119
    %148 = vmatprep.subr.mxu0 0.0
    %149 = vmatpush1.msra.mxu0 %v120
    %150 = vmatprep.subr.mxu0 0.0
    %151 = vmatpush1.msra.mxu0 %v121
    %152 = vmatprep.subr.mxu0 0.0
    %153 = vmatpush1.msra.mxu0 %v122
    %154 = vmatprep.subr.mxu0 0.0
    %155 = vmatpush1.msra.mxu0 %v123
    %156 = vmatprep.subr.mxu0 0.0
    %157 = vmatpush1.msra.mxu0 %v124
    %158 = vmatprep.subr.mxu0 0.0
    %159 = vmatpush1.msra.mxu0 %v125
    %160 = vmatprep.subr.mxu0 0.0
    %161 = vmatpush1.msra.mxu0 %v126
    %162 = vmatprep.subr.mxu0 0.0
    %163 = vmatpush1.msra.mxu0 %v127
    %164 = vmatprep.subr.mxu0 0.0
    %165 = vmatpush1.msra.mxu0 %v128
    %166 = vmatprep.subr.mxu0 0.0
    %167 = vmatpush1.msra.mxu0 %v129
    %168 = vmatprep.subr.mxu0 0.0
    %169 = vmatpush1.msra.mxu0 %v130
    %170 = vmatprep.subr.mxu0 0.0
    %171 = vmatpush1.msra.mxu0 0.0
    %172 = vmatprep.subr.mxu0 0.0
    %173 = vmatpush1.msra.mxu0 0.0
    %174 = vmatprep.subr.mxu0 0.0
    %175 = vmatpush1.msra.mxu0 0.0
    %176 = vmatprep.subr.mxu0 0.0
    %177 = vmatpush1.msra.mxu0 0.0
    %178 = vmatprep.subr.mxu0 0.0
    %179 = vmatpush1.msra.mxu0 0.0
    %180 = vmatprep.subr.mxu0 0.0
    %181 = vmatpush1.msra.mxu0 0.0
    %182 = vmatprep.subr.mxu0 0.0
    %183 = vmatpush1.msra.mxu0 0.0
    %184 = vmatprep.subr.mxu0 0.0
    %185 = vmatpush1.msra.mxu0 0.0
    %186 = vmatprep.subr.mxu0 0.0
    %187 = vmatpush1.msra.mxu0 0.0
    %188 = vmatprep.subr.mxu0 0.0
    %189 = vmatpush1.msra.mxu0 0.0
    %190 = vmatprep.subr.mxu0 0.0
    %191 = vmatpush1.msra.mxu0 0.0
    %192 = vmatprep.subr.mxu0 0.0
    %193 = vmatpush1.msra.mxu0 0.0
    %194 = vmatprep.subr.mxu0 0.0
    %195 = vmatpush1.msra.mxu0 0.0
    %196 = vmatprep.subr.mxu0 0.0
    %197 = vmatpush1.msra.mxu0 0.0
    %198 = vmatprep.subr.mxu0 0.0
    %199 = vmatpush1.msra.mxu0 0.0
    %200 = vmatprep.subr.mxu0 0.0
    %201 = vmatpush1.msra.mxu0 0.0
    %202 = vmatprep.mubr.f32.mxu0 0.0
    %203 = vmatmul.mubr.f32.gmra.mrb[0].mxu0 %v114
    %v204 = vpop.f32.mrb[0].mxu0
    %v205 = vadd.f32 %v136, %v204
    %v206 = vpop.f32.mrb[0].mxu0
    %207 = vdwg.mxu0
    %v208 = vmul.f32 %v205, 0.5
    %v209 = vmul.f32 %v205, 0.70710677
    %v210 = verf.f32.pop %v209
    %v211 = vadd.f32 %v210, 1.0
    %v212 = vmul.f32 %v208, %v211
    %v213 = vld [vmem:[#allocation8] sm:$0xff]
    %v214 = vld [vmem:[#allocation8 + $0x8] sm:$0xff]
    %v215 = vld [vmem:[#allocation8 + $0x10] sm:$0xff]
    %v216 = vld [vmem:[#allocation8 + $0x18] sm:$0xff]
    %v217 = vld [vmem:[#allocation8 + $0x20] sm:$0xff]
    %v218 = vld [vmem:[#allocation8 + $0x28] sm:$0xff]
    %v219 = vld [vmem:[#allocation8 + $0x30] sm:$0xff]
    %v220 = vld [vmem:[#allocation8 + $0x38] sm:$0xff]
    %v221 = vld [vmem:[#allocation8 + $0x40] sm:$0xff]
    %v222 = vld [vmem:[#allocation8 + $0x48] sm:$0xff]
    %v223 = vld [vmem:[#allocation8 + $0x50] sm:$0xff]
    %v224 = vld [vmem:[#allocation8 + $0x58] sm:$0xff]
    %v225 = vld [vmem:[#allocation8 + $0x60] sm:$0xff]
    %v226 = vld [vmem:[#allocation8 + $0x68] sm:$0xff]
    %v227 = vld [vmem:[#allocation8 + $0x70] sm:$0xff]
    %v228 = vld [vmem:[#allocation8 + $0x78] sm:$0xff]
    %v229 = vld [vmem:[#allocation10] sm:$0x1]
    %v231 = vlaneseq
    %v232 = vshrl.u32 %v231, 7
    %v233 = vsub.s32 0, %v232
    %v234 = vrot.slane %v229, %v233
    %236 = vmatprep.subr.mxu0 0.0
    %237 = vmatpush1.msra.mxu0 %v213
    %238 = vmatprep.subr.mxu0 0.0
    %239 = vmatpush1.msra.mxu0 %v214
    %240 = vmatprep.subr.mxu0 0.0
    %241 = vmatpush1.msra.mxu0 %v215
    %242 = vmatprep.subr.mxu0 0.0
    %243 = vmatpush1.msra.mxu0 %v216
    %244 = vmatprep.subr.mxu0 0.0
    %245 = vmatpush1.msra.mxu0 %v217
    %246 = vmatprep.subr.mxu0 0.0
    %247 = vmatpush1.msra.mxu0 %v218
    %248 = vmatprep.subr.mxu0 0.0
    %249 = vmatpush1.msra.mxu0 %v219
    %250 = vmatprep.subr.mxu0 0.0
    %251 = vmatpush1.msra.mxu0 %v220
    %252 = vmatprep.subr.mxu0 0.0
    %253 = vmatpush1.msra.mxu0 %v221
    %254 = vmatprep.subr.mxu0 0.0
    %255 = vmatpush1.msra.mxu0 %v222
    %256 = vmatprep.subr.mxu0 0.0
    %257 = vmatpush1.msra.mxu0 %v223
    %258 = vmatprep.subr.mxu0 0.0
    %259 = vmatpush1.msra.mxu0 %v224
    %260 = vmatprep.subr.mxu0 0.0
    %261 = vmatpush1.msra.mxu0 %v225
    %262 = vmatprep.subr.mxu0 0.0
    %263 = vmatpush1.msra.mxu0 %v226
    %264 = vmatprep.subr.mxu0 0.0
    %265 = vmatpush1.msra.mxu0 %v227
    %266 = vmatprep.subr.mxu0 0.0
    %267 = vmatpush1.msra.mxu0 %v228
    %268 = vmatprep.subr.mxu0 0.0
    %269 = vmatpush1.msra.mxu0 0.0
    %270 = vmatprep.subr.mxu0 0.0
    %271 = vmatpush1.msra.mxu0 0.0
    %272 = vmatprep.subr.mxu0 0.0
    %273 = vmatpush1.msra.mxu0 0.0
    %274 = vmatprep.subr.mxu0 0.0
    %275 = vmatpush1.msra.mxu0 0.0
    %276 = vmatprep.subr.mxu0 0.0
    %277 = vmatpush1.msra.mxu0 0.0
    %278 = vmatprep.subr.mxu0 0.0
    %279 = vmatpush1.msra.mxu0 0.0
    %280 = vmatprep.subr.mxu0 0.0
    %281 = vmatpush1.msra.mxu0 0.0
    %282 = vmatprep.subr.mxu0 0.0
    %283 = vmatpush1.msra.mxu0 0.0
    %284 = vmatprep.subr.mxu0 0.0
    %285 = vmatpush1.msra.mxu0 0.0
    %286 = vmatprep.subr.mxu0 0.0
    %287 = vmatpush1.msra.mxu0 0.0
    %288 = vmatprep.subr.mxu0 0.0
    %289 = vmatpush1.msra.mxu0 0.0
    %290 = vmatprep.subr.mxu0 0.0
    %291 = vmatpush1.msra.mxu0 0.0
    %292 = vmatprep.subr.mxu0 0.0
    %293 = vmatpush1.msra.mxu0 0.0
    %294 = vmatprep.subr.mxu0 0.0
    %295 = vmatpush1.msra.mxu0 0.0
    %296 = vmatprep.subr.mxu0 0.0
    %297 = vmatpush1.msra.mxu0 0.0
    %298 = vmatprep.subr.mxu0 0.0
    %299 = vmatpush1.msra.mxu0 0.0
    %300 = vmatprep.mubr.f32.mxu0 0.0
    %301 = vmatmul.mubr.f32.gmra.mrb[0].mxu0 %v212
    %v302 = vpop.f32.mrb[0].mxu0
    %v303 = vadd.f32 %v234, %v302
    %v304 = vpop.f32.mrb[0].mxu0
    %305 = vdwg.mxu0
    %v306 = vmul.f32 %v303, 0.5
    %v307 = vmul.f32 %v303, 0.70710677
    %v308 = verf.f32.pop %v307
    %v309 = vadd.f32 %v308, 1.0
    %v310 = vmul.f32 %v306, %v309
    %v311 = vld [vmem:[#allocation11] sm:$0xff]
    %v312 = vld [vmem:[#allocation11 + $0x8] sm:$0xff]
    %v313 = vld [vmem:[#allocation11 + $0x10] sm:$0xff]
    %v314 = vld [vmem:[#allocation11 + $0x18] sm:$0xff]
    %v315 = vld [vmem:[#allocation11 + $0x20] sm:$0xff]
    %v316 = vld [vmem:[#allocation11 + $0x28] sm:$0xff]
    %v317 = vld [vmem:[#allocation11 + $0x30] sm:$0xff]
    %v318 = vld [vmem:[#allocation11 + $0x38] sm:$0xff]
    %v319 = vld [vmem:[#allocation11 + $0x40] sm:$0xff]
    %v320 = vld [vmem:[#allocation11 + $0x48] sm:$0xff]
    %v321 = vld [vmem:[#allocation11 + $0x50] sm:$0xff]
    %v322 = vld [vmem:[#allocation11 + $0x58] sm:$0xff]
    %v323 = vld [vmem:[#allocation11 + $0x60] sm:$0xff]
    %v324 = vld [vmem:[#allocation11 + $0x68] sm:$0xff]
    %v325 = vld [vmem:[#allocation11 + $0x70] sm:$0xff]
    %v326 = vld [vmem:[#allocation11 + $0x78] sm:$0xff]
    %v327 = vld [vmem:[#allocation13] sm:$0x1]
    %v329 = vlaneseq
    %v330 = vshrl.u32 %v329, 7
    %v331 = vsub.s32 0, %v330
    %v332 = vrot.slane %v327, %v331
    %334 = vmatprep.subr.mxu0 0.0
    %335 = vmatpush1.msra.mxu0 %v311
    %336 = vmatprep.subr.mxu0 0.0
    %337 = vmatpush1.msra.mxu0 %v312
    %338 = vmatprep.subr.mxu0 0.0
    %339 = vmatpush1.msra.mxu0 %v313
    %340 = vmatprep.subr.mxu0 0.0
    %341 = vmatpush1.msra.mxu0 %v314
    %342 = vmatprep.subr.mxu0 0.0
    %343 = vmatpush1.msra.mxu0 %v315
    %344 = vmatprep.subr.mxu0 0.0
    %345 = vmatpush1.msra.mxu0 %v316
    %346 = vmatprep.subr.mxu0 0.0
    %347 = vmatpush1.msra.mxu0 %v317
    %348 = vmatprep.subr.mxu0 0.0
    %349 = vmatpush1.msra.mxu0 %v318
    %350 = vmatprep.subr.mxu0 0.0
    %351 = vmatpush1.msra.mxu0 %v319
    %352 = vmatprep.subr.mxu0 0.0
    %353 = vmatpush1.msra.mxu0 %v320
    %354 = vmatprep.subr.mxu0 0.0
    %355 = vmatpush1.msra.mxu0 %v321
    %356 = vmatprep.subr.mxu0 0.0
    %357 = vmatpush1.msra.mxu0 %v322
    %358 = vmatprep.subr.mxu0 0.0
    %359 = vmatpush1.msra.mxu0 %v323
    %360 = vmatprep.subr.mxu0 0.0
    %361 = vmatpush1.msra.mxu0 %v324
    %362 = vmatprep.subr.mxu0 0.0
    %363 = vmatpush1.msra.mxu0 %v325
    %364 = vmatprep.subr.mxu0 0.0
    %365 = vmatpush1.msra.mxu0 %v326
    %366 = vmatprep.subr.mxu0 0.0
    %367 = vmatpush1.msra.mxu0 0.0
    %368 = vmatprep.subr.mxu0 0.0
    %369 = vmatpush1.msra.mxu0 0.0
    %370 = vmatprep.subr.mxu0 0.0
    %371 = vmatpush1.msra.mxu0 0.0
    %372 = vmatprep.subr.mxu0 0.0
    %373 = vmatpush1.msra.mxu0 0.0
    %374 = vmatprep.subr.mxu0 0.0
    %375 = vmatpush1.msra.mxu0 0.0
    %376 = vmatprep.subr.mxu0 0.0
    %377 = vmatpush1.msra.mxu0 0.0
    %378 = vmatprep.subr.mxu0 0.0
    %379 = vmatpush1.msra.mxu0 0.0
    %380 = vmatprep.subr.mxu0 0.0
    %381 = vmatpush1.msra.mxu0 0.0
    %382 = vmatprep.subr.mxu0 0.0
    %383 = vmatpush1.msra.mxu0 0.0
    %384 = vmatprep.subr.mxu0 0.0
    %385 = vmatpush1.msra.mxu0 0.0
    %386 = vmatprep.subr.mxu0 0.0
    %387 = vmatpush1.msra.mxu0 0.0
    %388 = vmatprep.subr.mxu0 0.0
    %389 = vmatpush1.msra.mxu0 0.0
    %390 = vmatprep.subr.mxu0 0.0
    %391 = vmatpush1.msra.mxu0 0.0
    %392 = vmatprep.subr.mxu0 0.0
    %393 = vmatpush1.msra.mxu0 0.0
    %394 = vmatprep.subr.mxu0 0.0
    %395 = vmatpush1.msra.mxu0 0.0
    %396 = vmatprep.subr.mxu0 0.0
    %397 = vmatpush1.msra.mxu0 0.0
    %398 = vmatprep.mubr.f32.mxu0 0.0
    %399 = vmatmul.mubr.f32.gmra.mrb[0].mxu0 %v310
    %v400 = vpop.f32.mrb[0].mxu0
    %v401 = vadd.f32 %v332, %v400
    %v402 = vpop.f32.mrb[0].mxu0
    %403 = vdwg.mxu0
    %404 = vst [vmem:[#allocation14] sm:$0xff] %v401
    // Predicated region
    $region58: #{tpu_custom_call.1} parent=1 // pred_check
      _
    $region59: #{tpu_custom_call.1} parent=1 // pred_check_branch
      %406 = sbr.rel (0) target = $region61
    $region60: #{tpu_custom_call.1} parent=1 // pred_region
      %s408 = ssub.s32 128, 128
      %409 = vsyncadd [#allocation4], %s408
      %s411 = sshll.u32 [#allocation14], 4
      %s412 = int_to_ptr.vmem [resolvable:$true] %s411
      %414 = dma.vmem_to_hbm [thread:$0]  %s412, 128, %s7, [#allocation4]
    $region61: #{tpu_custom_call.1} parent=1 // pred_fallthru
      _
    // Predicated region
    $region62: #{tpu_custom_call.1} parent=1 // pred_check
      _
    $region63: #{tpu_custom_call.1} parent=1 // pred_check_branch
      %416 = sbr.rel (0) target = $region65
    $region64: #{tpu_custom_call.1} parent=1 // pred_region
      %417 = dma.done [#allocation4], 128
    $region65: #{tpu_custom_call.1} parent=1 // pred_fallthru
      _
    %418 = vsyncpa [#allocation3], 1
    %419 = vsyncpa [#allocation6], 1
    %420 = vsyncpa [#allocation9], 1
    %421 = vsyncpa [#allocation12], 1
    %422 = vsyncpa [#allocation4], 1

</llo_original>
